<compile_context>
chip_gen: v5e
topology: v5e:2x2
jax: 0.10.0
libtpu: 0.0.40
codegen_flags: <defaults>
</compile_context>

<pallas_src>
import functools

import jax
import jax.numpy as jnp
from jax import lax
from jax.experimental import pallas as pl
from jax.experimental.pallas import tpu as pltpu

# --- constants (from protein_learning / AlphaFold ideal backbone geometry) ---
ALL_ATOM_POSNS = {"N": 0, "CA": 1, "C": 2, "CB": 3}
BOND_LENS = {("C", "N"): 1.329, ("N", "CA"): 1.459, ("CA", "C"): 1.525, ("CA", "CA"): 3.80}
BOND_LEN_TOL = {("C", "N"): 0.02, ("N", "CA"): 0.02, ("CA", "C"): 0.02, ("CA", "CA"): 0.10}
BOND_LEN_OFFSET = {("C", "N"): 1, ("N", "CA"): 0, ("CA", "C"): 0, ("CA", "CA"): 1}

_SAFE_NORM_EPS = 1e-8  # safe_norm adds eps per component before summing (3 components)

_L_CN, _T_CN = BOND_LENS[("C", "N")], BOND_LEN_TOL[("C", "N")]
_L_NCA, _T_NCA = BOND_LENS[("N", "CA")], BOND_LEN_TOL[("N", "CA")]
_L_CAC, _T_CAC = BOND_LENS[("CA", "C")], BOND_LEN_TOL[("CA", "C")]
_L_CACA, _T_CACA = BOND_LENS[("CA", "CA")], BOND_LEN_TOL[("CA", "CA")]


def _sq_norm(dx, dy, dz):
    # matches safe_norm: sum(x^2 + eps) over the 3 coords
    return dx * dx + dy * dy + dz * dz + 3.0 * _SAFE_NORM_EPS


def _bond_dev(sq, ideal, tol):
    dev = jnp.sqrt(sq)
    d2 = jnp.square(dev - ideal) - tol * tol
    # relu + sqrt, with a where-guard so sqrt never sees the in-tolerance (==0) branch
    pos = d2 > 0.0
    return jnp.where(pos, jnp.sqrt(jnp.where(pos, d2, 1.0)), 0.0)


def _unpack_coords(coords_ref):
    nx, ny, nz = coords_ref[0], coords_ref[1], coords_ref[2]
    cax, cay, caz = coords_ref[3], coords_ref[4], coords_ref[5]
    cx, cy, cz = coords_ref[6], coords_ref[7], coords_ref[8]
    return (nx, ny, nz), (cax, cay, caz), (cx, cy, cz)


def _shift_next(x, n_pad):
    # x[:, i] -> x[:, (i+1) % n_pad]: one aligned full-vreg lane rotation on the XLU.
    # (axis must be non-negative for pltpu.roll.)
    return pltpu.roll(x, shift=n_pad - 1, axis=1)


def _bond_len_kernel_nomask(coords_ref, out_ref, *, n_valid):
    """Fast path: no masks, constant denominators (0.25/n, 0.25/(n-1)) baked in."""
    (nx, ny, nz), (cax, cay, caz), (cx, cy, cz) = _unpack_coords(coords_ref)
    tb, n_pad = nx.shape

    lane = lax.broadcasted_iota(jnp.int32, (tb, n_pad), 1)

    # offset-0 bonds (N_i-CA_i, CA_i-C_i): pair before reducing -> one XLU reduction
    off0 = (_bond_dev(_sq_norm(nx - cax, ny - cay, nz - caz), _L_NCA, _T_NCA)
            + _bond_dev(_sq_norm(cax - cx, cay - cy, caz - cz), _L_CAC, _T_CAC))
    if n_pad != n_valid:  # static branch: kill zero-padded tail columns
        off0 = off0 * (lane < n_valid).astype(jnp.float32)
    s_off0 = jnp.sum(off0, axis=-1, keepdims=True)

    # offset-1 bonds (C_i-N_{i+1}, CA_i-CA_{i+1}): rolled neighbours, one edge mask
    nx1, ny1, nz1 = (_shift_next(v, n_pad) for v in (nx, ny, nz))
    off1 = _bond_dev(_sq_norm(cx - nx1, cy - ny1, cz - nz1), _L_CN, _T_CN)
    cax1, cay1, caz1 = (_shift_next(v, n_pad) for v in (cax, cay, caz))
    off1 = off1 + _bond_dev(_sq_norm(cax - cax1, cay - cay1, caz - caz1), _L_CACA, _T_CACA)
    edge = (lane < (n_valid - 1)).astype(jnp.float32)  # kills roll wrap-around + padding
    s_off1 = jnp.sum(off1 * edge, axis=-1, keepdims=True)

    inv0 = 0.25 / float(n_valid)
    inv1 = 0.25 / float(max(n_valid - 1, 1))
    out_ref[...] = s_off0 * inv0 + s_off1 * inv1


def _bond_len_kernel_masked(coords_ref, mask_ref, scale_ref, out_ref):
    """Masked path.

    mask_ref : (tb, n_pad) int32, bit k = validity of bond k (bit order: C-N, N-CA,
               CA-C, CA-CA); offset-1 bonds and all padding columns/rows are already 0.
    scale_ref: (tb, 4) f32, pre-reduced 0.25 / clamp(count, 1), zeroed where count == 0.
    """
    (nx, ny, nz), (cax, cay, caz), (cx, cy, cz) = _unpack_coords(coords_ref)
    tb, n_pad = nx.shape

    pk = mask_ref[...]
    m_cn = (pk & 1).astype(jnp.float32)
    m_nca = ((pk >> 1) & 1).astype(jnp.float32)
    m_cac = ((pk >> 2) & 1).astype(jnp.float32)
    m_caca = ((pk >> 3) & 1).astype(jnp.float32)

    sc = scale_ref[...]
    s_cn, s_nca, s_cac, s_caca = sc[:, 0:1], sc[:, 1:2], sc[:, 2:3], sc[:, 3:4]

    nx1, ny1, nz1 = (_shift_next(v, n_pad) for v in (nx, ny, nz))
    acc = _bond_dev(_sq_norm(cx - nx1, cy - ny1, cz - nz1), _L_CN, _T_CN) * (m_cn * s_cn)
    acc = acc + _bond_dev(_sq_norm(nx - cax, ny - cay, nz - caz), _L_NCA, _T_NCA) * (m_nca * s_nca)
    acc = acc + _bond_dev(_sq_norm(cax - cx, cay - cy, caz - cz), _L_CAC, _T_CAC) * (m_cac * s_cac)
    cax1, cay1, caz1 = (_shift_next(v, n_pad) for v in (cax, cay, caz))
    acc = acc + _bond_dev(_sq_norm(cax - cax1, cay - cay1, caz - caz1), _L_CACA, _T_CACA) * (m_caca * s_caca)

    # single cross-lane reduction (masked-mean scales already folded in)
    out_ref[...] = jnp.sum(acc, axis=-1, keepdims=True)


def _round_up(x, m):
    return -(-x // m) * m


def _batch_tiling(b, n_pad):
    """Pick (b_pad, tb): big tiles (fewer grid steps, bigger DMAs), >= 2 grid steps when
    b >= 16 (v7x megacore split), coord block capped at ~4 MiB of VMEM."""
    vmem_cap = max(8, ((4 << 20) // (9 * 4 * n_pad)) // 8 * 8)
    if b <= 8:
        return b, b  # single full block (block dim == array dim is always legal)
    b_pad = _round_up(b, 8)
    cap = min(256, vmem_cap, max(8, b_pad // 2))
    tb, t = 8, 8
    while t <= cap:
        if b_pad % t == 0:
            tb = t
        t += 8
    return b_pad, tb


def backbone_bond_len_deviation_loss(atom_coords,
                                     atom_ty_order=None,
                                     atom_coord_mask=None,
                                     residue_indices=None,
                                     bonded_mask=None):
    """JAX/Pallas equivalent of BackboneBondLenDeviationLoss.forward.

    atom_coords: (b, n, a, 3). Returns loss of shape (b,), float32.
    """
    order = ALL_ATOM_POSNS if atom_ty_order is None else atom_ty_order
    b, n = atom_coords.shape[:2]
    i_n, i_ca, i_c = order["N"], order["CA"], order["C"]

    n_pad = _round_up(n, 128)
    b_pad, tb = _batch_tiling(b, n_pad)
    grid = (b_pad // tb,)

    # One fused gather+transpose: (b,n,a,3) -> (9,b,n), rows = [Nxyz, CAxyz, Cxyz],
    # zero-padded to (9, b_pad, n_pad) so rolls / reductions are lane-aligned.
    sel = jnp.asarray([i_n, i_ca, i_c], dtype=jnp.int32)
    coords = jnp.transpose(atom_coords[:, :, sel, :].astype(jnp.float32),
                           (2, 3, 0, 1)).reshape(9, b, n)
    if (b_pad, n_pad) != (b, n):
        coords = jnp.pad(coords, ((0, 0), (0, b_pad - b), (0, n_pad - n)))

    no_masks = (atom_coord_mask is None and residue_indices is None and bonded_mask is None)

    if no_masks:
        cost = pl.CostEstimate(flops=70 * b_pad * n_pad, transcendentals=8 * b_pad * n_pad,
                               bytes_accessed=36 * b_pad * n_pad + 4 * b_pad)
        out = pl.pallas_call(
            functools.partial(_bond_len_kernel_nomask, n_valid=n),
            out_shape=jax.ShapeDtypeStruct((b_pad, 1), jnp.float32),
            grid=grid,
            in_specs=[pl.BlockSpec((9, tb, n_pad), lambda i: (0, i, 0))],
            out_specs=pl.BlockSpec((tb, 1), lambda i: (i, 0)),
            compiler_params=pltpu.CompilerParams(
                dimension_semantics=("parallel",),
                allow_input_fusion=[True]),   # fuse gather/transpose producer into input DMA
            cost_estimate=cost,
        )(coords)
        return out[:b, 0]

    acm = None if atom_coord_mask is None else atom_coord_mask.astype(bool)
    ri = residue_indices
    bm = None if bonded_mask is None else bonded_mask.astype(bool)

    def pair_mask(a1_idx, a2_idx, offset):
        if offset == 1:
            m = jnp.ones((b, n - 1), dtype=bool)
            if ri is not None:
                m = m & ((ri[:, 1:] - ri[:, :-1]) <= 1)
            if acm is not None:
                m = m & (acm[:, :-1, a1_idx] & acm[:, 1:, a2_idx])
            if bm is not None:
                m = bm & m
            # trailing zero column kills the in-kernel roll wrap-around term
            m = jnp.pad(m, ((0, 0), (0, 1)), constant_values=False)
        else:
            m = jnp.ones((b, n), dtype=bool)
            if acm is not None:
                m = m & (acm[..., a1_idx] & acm[..., a2_idx])
        return m

    masks = [pair_mask(i_c, i_n, BOND_LEN_OFFSET[("C", "N")]),
             pair_mask(i_n, i_ca, BOND_LEN_OFFSET[("N", "CA")]),
             pair_mask(i_ca, i_c, BOND_LEN_OFFSET[("CA", "C")]),
             pair_mask(i_ca, i_ca, BOND_LEN_OFFSET[("CA", "CA")])]   # bit order: CN,NCA,CAC,CACA

    # Pre-reduced masked-mean denominators with the final /4 folded in (kept in f32).
    totals = jnp.stack([jnp.sum(m, axis=-1) for m in masks], axis=-1).astype(jnp.float32)  # (b,4)
    scale = jnp.where(totals == 0.0, 0.0, 0.25 / jnp.maximum(totals, 1.0))

    # Bit-pack the 4 bond masks into one int32 plane: 4 B/residue of mask HBM traffic.
    mi = [m.astype(jnp.int32) for m in masks]
    packed = mi[0] | (mi[1] << 1) | (mi[2] << 2) | (mi[3] << 3)                            # (b,n)
    if (b_pad, n_pad) != (b, n):
        packed = jnp.pad(packed, ((0, b_pad - b), (0, n_pad - n)))
    if b_pad != b:
        scale = jnp.pad(scale, ((0, b_pad - b), (0, 0)))

    cost = pl.CostEstimate(flops=85 * b_pad * n_pad, transcendentals=8 * b_pad * n_pad,
                           bytes_accessed=40 * b_pad * n_pad + 20 * b_pad)
    out = pl.pallas_call(
        _bond_len_kernel_masked,
        out_shape=jax.ShapeDtypeStruct((b_pad, 1), jnp.float32),
        grid=grid,
        in_specs=[pl.BlockSpec((9, tb, n_pad), lambda i: (0, i, 0)),
                  pl.BlockSpec((tb, n_pad), lambda i: (i, 0)),
                  pl.BlockSpec((tb, 4), lambda i: (i, 0))],
        out_specs=pl.BlockSpec((tb, 1), lambda i: (i, 0)),
        compiler_params=pltpu.CompilerParams(
            dimension_semantics=("parallel",),
            allow_input_fusion=[True, True, True]),
        cost_estimate=cost,
    )(coords, packed, scale)
    return out[:b, 0]


# --- pure-JAX reference (mirrors the PyTorch forward) for correctness checks ---
def _reference_loss(atom_coords, atom_coord_mask=None, residue_indices=None, bonded_mask=None):
    order = ALL_ATOM_POSNS
    atom_coords = atom_coords.astype(jnp.float32)
    b, n = atom_coords.shape[:2]

    def safe_norm(x):
        return jnp.sqrt(jnp.sum(jnp.square(x) + _SAFE_NORM_EPS, axis=-1))

    def masked_mean(t, m):
        t = jnp.where(m, t, 0.0)
        total = jnp.sum(m, axis=-1).astype(jnp.float32)
        mean = jnp.sum(t, axis=-1) / jnp.maximum(total, 1.0)
        return jnp.where(total == 0.0, 0.0, mean)

    loss = 0.0
    for key in [("C", "N"), ("N", "CA"), ("CA", "C"), ("CA", "CA")]:
        a1, a2 = order[key[0]], order[key[1]]
        first, second = atom_coords[:, :, a1], atom_coords[:, :, a2]
        offset = BOND_LEN_OFFSET[key]
        if offset == 1:
            dev = safe_norm(first[:, :-1] - second[:, 1:])
            vm = jnp.ones((b, n - 1), dtype=bool)
            if residue_indices is not None:
                vm = vm & ((residue_indices[:, 1:] - residue_indices[:, :-1]) <= 1)
            if atom_coord_mask is not None:
                vm = vm & (atom_coord_mask[:, :-1, a1] & atom_coord_mask[:, 1:, a2])
            if bonded_mask is not None:
                vm = bonded_mask.astype(bool) & vm
        else:
            dev = safe_norm(first - second)
            vm = jnp.ones((b, n), dtype=bool)
            if atom_coord_mask is not None:
                vm = vm & (atom_coord_mask[..., a1] & atom_coord_mask[..., a2])
        v = jnp.maximum(jnp.square(dev - BOND_LENS[key]) - BOND_LEN_TOL[key] ** 2, 0.0)
        v = jnp.sqrt(v)
        loss = loss + masked_mean(v, vm)
    return loss / 4.0


if __name__ == "__main__":
    key = jax.random.PRNGKey(0)
    b, n, a = 2, 128, 4  # batch, residues, atom types (N, CA, C, CB)
    k0, k1, k2 = jax.random.split(key, 3)
    atom_coords = 3.0 * jax.random.normal(k0, (b, n, a, 3), dtype=jnp.float32)

    # --- no-mask specialized fast path (aligned shapes) ---
    loss = jax.block_until_ready(backbone_bond_len_deviation_loss(atom_coords))
    ref = _reference_loss(atom_coords)
    assert loss.shape == (b,)
    assert jnp.allclose(loss, ref, atol=1e-5, rtol=1e-4), (loss, ref)

    # --- masked path (atom mask + chain breaks + bonded mask) ---
    atom_coord_mask = jax.random.bernoulli(k1, 0.9, (b, n, a))
    residue_indices = jnp.cumsum(
        jnp.where(jax.random.bernoulli(k2, 0.05, (b, n)), 3, 1), axis=-1).astype(jnp.int32)
    bonded_mask = jnp.ones((b, n - 1), dtype=bool).at[:, n // 2].set(False)

    loss_m = jax.block_until_ready(backbone_bond_len_deviation_loss(
        atom_coords, atom_coord_mask=atom_coord_mask,
        residue_indices=residue_indices, bonded_mask=bonded_mask))
    ref_m = _reference_loss(atom_coords, atom_coord_mask=atom_coord_mask,
                            residue_indices=residue_indices, bonded_mask=bonded_mask)
    assert loss_m.shape == (b,)
    assert jnp.allclose(loss_m, ref_m, atol=1e-5, rtol=1e-4), (loss_m, ref_m)

    # --- non-aligned shapes exercise the batch / lane zero-padding paths ---
    b2, n2 = 3, 100
    ka, kb, kc = jax.random.split(jax.random.PRNGKey(1), 3)
    coords2 = 3.0 * jax.random.normal(ka, (b2, n2, a, 3), dtype=jnp.float32)
    mask2 = jax.random.bernoulli(kb, 0.85, (b2, n2, a))
    ridx2 = jnp.cumsum(jnp.where(jax.random.bernoulli(kc, 0.05, (b2, n2)), 2, 1),
                       axis=-1).astype(jnp.int32)

    loss2 = jax.block_until_ready(backbone_bond_len_deviation_loss(coords2))
    assert jnp.allclose(loss2, _reference_loss(coords2), atol=1e-5, rtol=1e-4)

    loss2m = jax.block_until_ready(backbone_bond_len_deviation_loss(
        coords2, atom_coord_mask=mask2, residue_indices=ridx2))
    ref2m = _reference_loss(coords2, atom_coord_mask=mask2, residue_indices=ridx2)
    assert jnp.allclose(loss2m, ref2m, atol=1e-5, rtol=1e-4), (loss2m, ref2m)

    print("KERNEL_OK")
</pallas_src>

<mosaic_0001>
module attributes {stable_mosaic.version = 11 : i64} {
  func.func @_bond_len_kernel_nomask(%arg0: i32, %arg1: memref<9x2x128xf32, #tpu.memory_space<vmem>>, %arg2: memref<2x1xf32, #tpu.memory_space<vmem>>) attributes {dimension_semantics = [#tpu.dimension_semantics<parallel>], iteration_bounds = array<i64: 1>, scalar_prefetch = 0 : i64, scratch_operands = 0 : i64, tpu.core_type = #tpu.core_type<tc>, window_params = [{transform_indices = @transform_0, window_bounds = array<i64: 9, 2, 128>}, {transform_indices = @transform_1, window_bounds = array<i64: 2, 1>}]} {
    %c0 = arith.constant 0 : index
    %c0_0 = arith.constant 0 : index
    %c0_1 = arith.constant 0 : index
    %0 = vector.load %arg1[%c0, %c0_0, %c0_1] : memref<9x2x128xf32, #tpu.memory_space<vmem>>, vector<1x2x128xf32>
    %1 = vector.shape_cast %0 : vector<1x2x128xf32> to vector<2x128xf32>
    %c1 = arith.constant 1 : index
    %c0_2 = arith.constant 0 : index
    %c0_3 = arith.constant 0 : index
    %2 = vector.load %arg1[%c1, %c0_2, %c0_3] : memref<9x2x128xf32, #tpu.memory_space<vmem>>, vector<1x2x128xf32>
    %3 = vector.shape_cast %2 : vector<1x2x128xf32> to vector<2x128xf32>
    %c2 = arith.constant 2 : index
    %c0_4 = arith.constant 0 : index
    %c0_5 = arith.constant 0 : index
    %4 = vector.load %arg1[%c2, %c0_4, %c0_5] : memref<9x2x128xf32, #tpu.memory_space<vmem>>, vector<1x2x128xf32>
    %5 = vector.shape_cast %4 : vector<1x2x128xf32> to vector<2x128xf32>
    %c3 = arith.constant 3 : index
    %c0_6 = arith.constant 0 : index
    %c0_7 = arith.constant 0 : index
    %6 = vector.load %arg1[%c3, %c0_6, %c0_7] : memref<9x2x128xf32, #tpu.memory_space<vmem>>, vector<1x2x128xf32>
    %7 = vector.shape_cast %6 : vector<1x2x128xf32> to vector<2x128xf32>
    %c4 = arith.constant 4 : index
    %c0_8 = arith.constant 0 : index
    %c0_9 = arith.constant 0 : index
    %8 = vector.load %arg1[%c4, %c0_8, %c0_9] : memref<9x2x128xf32, #tpu.memory_space<vmem>>, vector<1x2x128xf32>
    %9 = vector.shape_cast %8 : vector<1x2x128xf32> to vector<2x128xf32>
    %c5 = arith.constant 5 : index
    %c0_10 = arith.constant 0 : index
    %c0_11 = arith.constant 0 : index
    %10 = vector.load %arg1[%c5, %c0_10, %c0_11] : memref<9x2x128xf32, #tpu.memory_space<vmem>>, vector<1x2x128xf32>
    %11 = vector.shape_cast %10 : vector<1x2x128xf32> to vector<2x128xf32>
    %c6 = arith.constant 6 : index
    %c0_12 = arith.constant 0 : index
    %c0_13 = arith.constant 0 : index
    %12 = vector.load %arg1[%c6, %c0_12, %c0_13] : memref<9x2x128xf32, #tpu.memory_space<vmem>>, vector<1x2x128xf32>
    %13 = vector.shape_cast %12 : vector<1x2x128xf32> to vector<2x128xf32>
    %c7 = arith.constant 7 : index
    %c0_14 = arith.constant 0 : index
    %c0_15 = arith.constant 0 : index
    %14 = vector.load %arg1[%c7, %c0_14, %c0_15] : memref<9x2x128xf32, #tpu.memory_space<vmem>>, vector<1x2x128xf32>
    %15 = vector.shape_cast %14 : vector<1x2x128xf32> to vector<2x128xf32>
    %c8 = arith.constant 8 : index
    %c0_16 = arith.constant 0 : index
    %c0_17 = arith.constant 0 : index
    %16 = vector.load %arg1[%c8, %c0_16, %c0_17] : memref<9x2x128xf32, #tpu.memory_space<vmem>>, vector<1x2x128xf32>
    %17 = vector.shape_cast %16 : vector<1x2x128xf32> to vector<2x128xf32>
    %18 = tpu.iota {dimensions = array<i32: 1>} : vector<2x128xi32>
    %19 = arith.subf %1, %7 : vector<2x128xf32>
    %20 = arith.subf %3, %9 : vector<2x128xf32>
    %21 = arith.subf %5, %11 : vector<2x128xf32>
    %22 = arith.mulf %19, %19 : vector<2x128xf32>
    %23 = arith.mulf %20, %20 : vector<2x128xf32>
    %24 = arith.addf %22, %23 : vector<2x128xf32>
    %25 = arith.mulf %21, %21 : vector<2x128xf32>
    %26 = arith.addf %24, %25 : vector<2x128xf32>
    %cst = arith.constant 3.000000e-08 : f32
    %27 = vector.broadcast %cst : f32 to vector<2x128xf32>
    %28 = arith.addf %26, %27 : vector<2x128xf32>
    %29 = math.sqrt %28 : vector<2x128xf32>
    %cst_18 = arith.constant 1.459000e+00 : f32
    %30 = vector.broadcast %cst_18 : f32 to vector<2x128xf32>
    %31 = arith.subf %29, %30 : vector<2x128xf32>
    %32 = arith.mulf %31, %31 : vector<2x128xf32>
    %cst_19 = arith.constant 4.000000e-04 : f32
    %33 = vector.broadcast %cst_19 : f32 to vector<2x128xf32>
    %34 = arith.subf %32, %33 : vector<2x128xf32>
    %cst_20 = arith.constant 0.000000e+00 : f32
    %35 = vector.broadcast %cst_20 : f32 to vector<2x128xf32>
    %36 = arith.cmpf ogt, %34, %35 : vector<2x128xf32>
    %cst_21 = arith.constant 1.000000e+00 : f32
    %37 = vector.broadcast %cst_21 : f32 to vector<2x128xf32>
    %38 = arith.select %36, %34, %37 : vector<2x128xi1>, vector<2x128xf32>
    %39 = math.sqrt %38 : vector<2x128xf32>
    %cst_22 = arith.constant 0.000000e+00 : f32
    %40 = vector.broadcast %cst_22 : f32 to vector<2x128xf32>
    %41 = arith.select %36, %39, %40 : vector<2x128xi1>, vector<2x128xf32>
    %42 = arith.subf %7, %13 : vector<2x128xf32>
    %43 = arith.subf %9, %15 : vector<2x128xf32>
    %44 = arith.subf %11, %17 : vector<2x128xf32>
    %45 = arith.mulf %42, %42 : vector<2x128xf32>
    %46 = arith.mulf %43, %43 : vector<2x128xf32>
    %47 = arith.addf %45, %46 : vector<2x128xf32>
    %48 = arith.mulf %44, %44 : vector<2x128xf32>
    %49 = arith.addf %47, %48 : vector<2x128xf32>
    %cst_23 = arith.constant 3.000000e-08 : f32
    %50 = vector.broadcast %cst_23 : f32 to vector<2x128xf32>
    %51 = arith.addf %49, %50 : vector<2x128xf32>
    %52 = math.sqrt %51 : vector<2x128xf32>
    %cst_24 = arith.constant 1.525000e+00 : f32
    %53 = vector.broadcast %cst_24 : f32 to vector<2x128xf32>
    %54 = arith.subf %52, %53 : vector<2x128xf32>
    %55 = arith.mulf %54, %54 : vector<2x128xf32>
    %cst_25 = arith.constant 4.000000e-04 : f32
    %56 = vector.broadcast %cst_25 : f32 to vector<2x128xf32>
    %57 = arith.subf %55, %56 : vector<2x128xf32>
    %cst_26 = arith.constant 0.000000e+00 : f32
    %58 = vector.broadcast %cst_26 : f32 to vector<2x128xf32>
    %59 = arith.cmpf ogt, %57, %58 : vector<2x128xf32>
    %cst_27 = arith.constant 1.000000e+00 : f32
    %60 = vector.broadcast %cst_27 : f32 to vector<2x128xf32>
    %61 = arith.select %59, %57, %60 : vector<2x128xi1>, vector<2x128xf32>
    %62 = math.sqrt %61 : vector<2x128xf32>
    %cst_28 = arith.constant 0.000000e+00 : f32
    %63 = vector.broadcast %cst_28 : f32 to vector<2x128xf32>
    %64 = arith.select %59, %62, %63 : vector<2x128xi1>, vector<2x128xf32>
    %65 = arith.addf %41, %64 : vector<2x128xf32>
    %cst_29 = arith.constant dense<0.000000e+00> : vector<2xf32>
    %66 = vector.multi_reduction <add>, %65, %cst_29 [1] : vector<2x128xf32> to vector<2xf32>
    %67 = vector.shape_cast %66 : vector<2xf32> to vector<2x1xf32>
    %c127_i32 = arith.constant 127 : i32
    %68 = tpu.dynamic_rotate %1 by %c127_i32 dim 1 : vector<2x128xf32>, i32 -> vector<2x128xf32>
    %c127_i32_30 = arith.constant 127 : i32
    %69 = tpu.dynamic_rotate %3 by %c127_i32_30 dim 1 : vector<2x128xf32>, i32 -> vector<2x128xf32>
    %c127_i32_31 = arith.constant 127 : i32
    %70 = tpu.dynamic_rotate %5 by %c127_i32_31 dim 1 : vector<2x128xf32>, i32 -> vector<2x128xf32>
    %71 = arith.subf %13, %68 : vector<2x128xf32>
    %72 = arith.subf %15, %69 : vector<2x128xf32>
    %73 = arith.subf %17, %70 : vector<2x128xf32>
    %74 = arith.mulf %71, %71 : vector<2x128xf32>
    %75 = arith.mulf %72, %72 : vector<2x128xf32>
    %76 = arith.addf %74, %75 : vector<2x128xf32>
    %77 = arith.mulf %73, %73 : vector<2x128xf32>
    %78 = arith.addf %76, %77 : vector<2x128xf32>
    %cst_32 = arith.constant 3.000000e-08 : f32
    %79 = vector.broadcast %cst_32 : f32 to vector<2x128xf32>
    %80 = arith.addf %78, %79 : vector<2x128xf32>
    %81 = math.sqrt %80 : vector<2x128xf32>
    %cst_33 = arith.constant 1.329000e+00 : f32
    %82 = vector.broadcast %cst_33 : f32 to vector<2x128xf32>
    %83 = arith.subf %81, %82 : vector<2x128xf32>
    %84 = arith.mulf %83, %83 : vector<2x128xf32>
    %cst_34 = arith.constant 4.000000e-04 : f32
    %85 = vector.broadcast %cst_34 : f32 to vector<2x128xf32>
    %86 = arith.subf %84, %85 : vector<2x128xf32>
    %cst_35 = arith.constant 0.000000e+00 : f32
    %87 = vector.broadcast %cst_35 : f32 to vector<2x128xf32>
    %88 = arith.cmpf ogt, %86, %87 : vector<2x128xf32>
    %cst_36 = arith.constant 1.000000e+00 : f32
    %89 = vector.broadcast %cst_36 : f32 to vector<2x128xf32>
    %90 = arith.select %88, %86, %89 : vector<2x128xi1>, vector<2x128xf32>
    %91 = math.sqrt %90 : vector<2x128xf32>
    %cst_37 = arith.constant 0.000000e+00 : f32
    %92 = vector.broadcast %cst_37 : f32 to vector<2x128xf32>
    %93 = arith.select %88, %91, %92 : vector<2x128xi1>, vector<2x128xf32>
    %c127_i32_38 = arith.constant 127 : i32
    %94 = tpu.dynamic_rotate %7 by %c127_i32_38 dim 1 : vector<2x128xf32>, i32 -> vector<2x128xf32>
    %c127_i32_39 = arith.constant 127 : i32
    %95 = tpu.dynamic_rotate %9 by %c127_i32_39 dim 1 : vector<2x128xf32>, i32 -> vector<2x128xf32>
    %c127_i32_40 = arith.constant 127 : i32
    %96 = tpu.dynamic_rotate %11 by %c127_i32_40 dim 1 : vector<2x128xf32>, i32 -> vector<2x128xf32>
    %97 = arith.subf %7, %94 : vector<2x128xf32>
    %98 = arith.subf %9, %95 : vector<2x128xf32>
    %99 = arith.subf %11, %96 : vector<2x128xf32>
    %100 = arith.mulf %97, %97 : vector<2x128xf32>
    %101 = arith.mulf %98, %98 : vector<2x128xf32>
    %102 = arith.addf %100, %101 : vector<2x128xf32>
    %103 = arith.mulf %99, %99 : vector<2x128xf32>
    %104 = arith.addf %102, %103 : vector<2x128xf32>
    %cst_41 = arith.constant 3.000000e-08 : f32
    %105 = vector.broadcast %cst_41 : f32 to vector<2x128xf32>
    %106 = arith.addf %104, %105 : vector<2x128xf32>
    %107 = math.sqrt %106 : vector<2x128xf32>
    %cst_42 = arith.constant 3.800000e+00 : f32
    %108 = vector.broadcast %cst_42 : f32 to vector<2x128xf32>
    %109 = arith.subf %107, %108 : vector<2x128xf32>
    %110 = arith.mulf %109, %109 : vector<2x128xf32>
    %cst_43 = arith.constant 0.00999999977 : f32
    %111 = vector.broadcast %cst_43 : f32 to vector<2x128xf32>
    %112 = arith.subf %110, %111 : vector<2x128xf32>
    %cst_44 = arith.constant 0.000000e+00 : f32
    %113 = vector.broadcast %cst_44 : f32 to vector<2x128xf32>
    %114 = arith.cmpf ogt, %112, %113 : vector<2x128xf32>
    %cst_45 = arith.constant 1.000000e+00 : f32
    %115 = vector.broadcast %cst_45 : f32 to vector<2x128xf32>
    %116 = arith.select %114, %112, %115 : vector<2x128xi1>, vector<2x128xf32>
    %117 = math.sqrt %116 : vector<2x128xf32>
    %cst_46 = arith.constant 0.000000e+00 : f32
    %118 = vector.broadcast %cst_46 : f32 to vector<2x128xf32>
    %119 = arith.select %114, %117, %118 : vector<2x128xi1>, vector<2x128xf32>
    %120 = arith.addf %93, %119 : vector<2x128xf32>
    %c127_i32_47 = arith.constant 127 : i32
    %121 = vector.broadcast %c127_i32_47 : i32 to vector<2x128xi32>
    %122 = arith.cmpi slt, %18, %121 : vector<2x128xi32>
    %123 = arith.extui %122 : vector<2x128xi1> to vector<2x128xi32>
    %124 = arith.sitofp %123 : vector<2x128xi32> to vector<2x128xf32>
    %125 = arith.mulf %120, %124 : vector<2x128xf32>
    %cst_48 = arith.constant dense<0.000000e+00> : vector<2xf32>
    %126 = vector.multi_reduction <add>, %125, %cst_48 [1] : vector<2x128xf32> to vector<2xf32>
    %127 = vector.shape_cast %126 : vector<2xf32> to vector<2x1xf32>
    %cst_49 = arith.constant 0.001953125 : f32
    %128 = vector.broadcast %cst_49 : f32 to vector<2x1xf32>
    %129 = arith.mulf %67, %128 : vector<2x1xf32>
    %cst_50 = arith.constant 0.00196850393 : f32
    %130 = vector.broadcast %cst_50 : f32 to vector<2x1xf32>
    %131 = arith.mulf %127, %130 : vector<2x1xf32>
    %132 = arith.addf %129, %131 : vector<2x1xf32>
    %c0_51 = arith.constant 0 : index
    %c0_52 = arith.constant 0 : index
    %133 = vector.load %arg2[%c0_51, %c0_52] : memref<2x1xf32, #tpu.memory_space<vmem>>, vector<2x1xf32>
    tpu.vector_store %arg2[%c0_51, %c0_52], %132 {strides = array<i32>} : memref<2x1xf32, #tpu.memory_space<vmem>>, vector<2x1xf32>,
    return
  }
  func.func @transform_0(%arg0: i32) -> (i32, i32, i32) {
    %c0_i32 = arith.constant 0 : i32
    %c0_i32_0 = arith.constant 0 : i32
    %c0_i32_1 = arith.constant 0 : i32
    return %c0_i32, %arg0, %c0_i32_0 : i32, i32, i32
  }
  func.func @transform_1(%arg0: i32) -> (i32, i32) {
    %c0_i32 = arith.constant 0 : i32
    %c0_i32_0 = arith.constant 0 : i32
    return %arg0, %c0_i32 : i32, i32
  }
}

</mosaic_0001>

<llo_original>
// kernel: tpu_custom_call.1
$region0: #{tpu_custom_call.1}
  #allocation0 [shape = 'u32[]', space=smem, size = 0x4, offset = 0x4, fixed_abs, tag = 'smem constant byte address 0x4 - core index']
  #allocation1 [shape = 'u32[72,128]{1,0:T(1,128)}', space=vmem, size = 0x9000, scoped, tag = 'internal scratch']
  %s0 = inlined_call_operand.hbm [shape: f32[9,2,128], index: 0, kind: input, shape index: {}]
  %s1 = inlined_call_operand.vmem [shape: f32[2,1], index: 1, kind: output, shape index: {}]
  %s2 = sld [smem:[#allocation0]]
  $region18: #{tpu_custom_call.1} parent=0
    _
  %s4 = ssub.s32 1, %s2
  %s5 = scalar_select 0, %s4, %s2
  $region1: #{tpu_custom_call.1} parent=0
    #allocation2 [shape = 'u8[9216]{0}', space=vmem, size = 0x2400, scoped, tag = 'input window, operand 0, single buffered']
    #allocation3 [shape = 's32[1]{0}', space=sflag, size = 0x4, scoped, tag = 'scoped memory for tpu_custom_call.1']
    %6 = vsyncpa [#allocation3], 0
    // Predicated region
    $region2: #{tpu_custom_call.1} parent=1 // pred_check
      _
    $region3: #{tpu_custom_call.1} parent=1 // pred_check_branch
      %8 = sbr.rel (0) target = $region5
    $region4: #{tpu_custom_call.1} parent=1 // pred_region
      %10 = vsyncadd [#allocation3], 0
      %s11 = sshll.u32 %s0, 4
      %s12 = int_to_ptr.hbm [resolvable:$true] %s11
      %s13 = sshll.u32 [#allocation2], 4
      %s14 = int_to_ptr.vmem [resolvable:$true] %s13
      %19 = dma.hbm_to_vmem [thread:$0]  %s12, 288, %s14, [#allocation3], 32, 32, 2
    $region5: #{tpu_custom_call.1} parent=1 // pred_fallthru
      _
    // Predicated region
    $region6: #{tpu_custom_call.1} parent=1 // pred_check
      _
    $region7: #{tpu_custom_call.1} parent=1 // pred_check_branch
      %21 = sbr.rel (0) target = $region9
    $region8: #{tpu_custom_call.1} parent=1 // pred_region
      %23 = dma.done [#allocation3], 288
    $region9: #{tpu_custom_call.1} parent=1 // pred_fallthru
      _
    %v24 = vld [vmem:[#allocation2] sm:$0x3]
    %s25 = scalar_lea.vmem [#allocation2], 2
    %v26 = vld [vmem:[%s25] sm:$0x3]
    %s27 = scalar_lea.vmem [#allocation2], 4
    %v28 = vld [vmem:[%s27] sm:$0x3]
    %s29 = scalar_lea.vmem [#allocation2], 6
    %v30 = vld [vmem:[%s29] sm:$0x3]
    %s31 = scalar_lea.vmem [#allocation2], 8
    %v32 = vld [vmem:[%s31] sm:$0x3]
    %s33 = scalar_lea.vmem [#allocation2], 10
    %v34 = vld [vmem:[%s33] sm:$0x3]
    %s35 = scalar_lea.vmem [#allocation2], 12
    %v36 = vld [vmem:[%s35] sm:$0x3]
    %s37 = scalar_lea.vmem [#allocation2], 14
    %v38 = vld [vmem:[%s37] sm:$0x3]
    %s39 = scalar_lea.vmem [#allocation2], 16
    %v40 = vld [vmem:[%s39] sm:$0x3]
    %v41 = vlaneseq
    %v42 = vand.u32 %v41, 127
    %v43 = vsub.f32 %v24, %v30
    %v44 = vsub.f32 %v26, %v32
    %v45 = vsub.f32 %v28, %v34
    %v46 = vmul.f32 %v43, %v43
    %v47 = vmul.f32 %v44, %v44
    %v48 = vadd.f32 %v46, %v47
    %v49 = vmul.f32 %v45, %v45
    %v50 = vadd.f32 %v48, %v49
    %v51 = vadd.f32 %v50, 3e-08
    %v52 = vrsqrt.pop %v51
    %v53 = vmul.f32 %v52, %v51
    %v54 = vmul.f32 %v53, %v52
    %v55 = vmul.f32 0.5, %v54
    %v56 = vsub.f32 1.5, %v55
    %v57 = vmul.f32 %v52, %v56
    %v58 = vmul.f32 %v51, %v57
    %vm59 = vcmp.eq.f32.partialorder %v51, inf
    %v60 = vsel %vm59, %v51, %v58
    %vm61 = vcmp.eq.f32.partialorder %v51, 0.0
    %v62 = vand.u32 %v51, 2147483648
    %v63 = vsel %vm61, %v62, %v60
    %v64 = vsub.f32 %v63, 1.459
    %v65 = vmul.f32 %v64, %v64
    %v66 = vsub.f32 %v65, 0.0004
    %vm67 = vcmp.gt.f32.partialorder %v66, 0.0
    %v68 = vsel %vm67, %v66, 1.0
    %v69 = vrsqrt.pop %v68
    %v70 = vmul.f32 %v69, %v68
    %v71 = vmul.f32 %v70, %v69
    %v72 = vmul.f32 0.5, %v71
    %v73 = vsub.f32 1.5, %v72
    %v74 = vmul.f32 %v69, %v73
    %v75 = vmul.f32 %v68, %v74
    %vm76 = vcmp.eq.f32.partialorder %v68, inf
    %v77 = vsel %vm76, %v68, %v75
    %vm78 = vcmp.eq.f32.partialorder %v68, 0.0
    %v79 = vand.u32 %v68, 2147483648
    %v80 = vsel %vm78, %v79, %v77
    %v81 = vsel %vm67, %v80, 0.0
    %v82 = vsub.f32 %v30, %v36
    %v83 = vsub.f32 %v32, %v38
    %v84 = vsub.f32 %v34, %v40
    %v85 = vmul.f32 %v82, %v82
    %v86 = vmul.f32 %v83, %v83
    %v87 = vadd.f32 %v85, %v86
    %v88 = vmul.f32 %v84, %v84
    %v89 = vadd.f32 %v87, %v88
    %v90 = vadd.f32 %v89, 3e-08
    %v91 = vrsqrt.pop %v90
    %v92 = vmul.f32 %v91, %v90
    %v93 = vmul.f32 %v92, %v91
    %v94 = vmul.f32 0.5, %v93
    %v95 = vsub.f32 1.5, %v94
    %v96 = vmul.f32 %v91, %v95
    %v97 = vmul.f32 %v90, %v96
    %vm98 = vcmp.eq.f32.partialorder %v90, inf
    %v99 = vsel %vm98, %v90, %v97
    %vm100 = vcmp.eq.f32.partialorder %v90, 0.0
    %v101 = vand.u32 %v90, 2147483648
    %v102 = vsel %vm100, %v101, %v99
    %v103 = vsub.f32 %v102, 1.525
    %v104 = vmul.f32 %v103, %v103
    %v105 = vsub.f32 %v104, 0.0004
    %vm106 = vcmp.gt.f32.partialorder %v105, 0.0
    %v107 = vsel %vm106, %v105, 1.0
    %v108 = vrsqrt.pop %v107
    %v109 = vmul.f32 %v108, %v107
    %v110 = vmul.f32 %v109, %v108
    %v111 = vmul.f32 0.5, %v110
    %v112 = vsub.f32 1.5, %v111
    %v113 = vmul.f32 %v108, %v112
    %v114 = vmul.f32 %v107, %v113
    %vm115 = vcmp.eq.f32.partialorder %v107, inf
    %v116 = vsel %vm115, %v107, %v114
    %vm117 = vcmp.eq.f32.partialorder %v107, 0.0
    %v118 = vand.u32 %v107, 2147483648
    %v119 = vsel %vm117, %v118, %v116
    %v120 = vsel %vm106, %v119, 0.0
    %v121 = vadd.f32 %v81, %v120
    %vm122 = vcmask 1041408
    %v123 = vsel %vm122, %v121, 0.0
    %124 = vadd.xlane.f32.xlu0 %v123
    %v125 = vpop.xlane.xlu0 %124
    %126 = vrot.lane.b32.xlu0 %v24, 127
    %v127 = vpop.permute.xlu0 %126
    %128 = vrot.lane.b32.xlu0 %v26, 127
    %v129 = vpop.permute.xlu0 %128
    %130 = vrot.lane.b32.xlu0 %v28, 127
    %v131 = vpop.permute.xlu0 %130
    %v132 = vsub.f32 %v36, %v127
    %v133 = vsub.f32 %v38, %v129
    %v134 = vsub.f32 %v40, %v131
    %v135 = vmul.f32 %v132, %v132
    %v136 = vmul.f32 %v133, %v133
    %v137 = vadd.f32 %v135, %v136
    %v138 = vmul.f32 %v134, %v134
    %v139 = vadd.f32 %v137, %v138
    %v140 = vadd.f32 %v139, 3e-08
    %v141 = vrsqrt.pop %v140
    %v142 = vmul.f32 %v141, %v140
    %v143 = vmul.f32 %v142, %v141
    %v144 = vmul.f32 0.5, %v143
    %v145 = vsub.f32 1.5, %v144
    %v146 = vmul.f32 %v141, %v145
    %v147 = vmul.f32 %v140, %v146
    %vm148 = vcmp.eq.f32.partialorder %v140, inf
    %v149 = vsel %vm148, %v140, %v147
    %vm150 = vcmp.eq.f32.partialorder %v140, 0.0
    %v151 = vand.u32 %v140, 2147483648
    %v152 = vsel %vm150, %v151, %v149
    %v153 = vsub.f32 %v152, 1.329
    %v154 = vmul.f32 %v153, %v153
    %v155 = vsub.f32 %v154, 0.0004
    %vm156 = vcmp.gt.f32.partialorder %v155, 0.0
    %v157 = vsel %vm156, %v155, 1.0
    %v158 = vrsqrt.pop %v157
    %v159 = vmul.f32 %v158, %v157
    %v160 = vmul.f32 %v159, %v158
    %v161 = vmul.f32 0.5, %v160
    %v162 = vsub.f32 1.5, %v161
    %v163 = vmul.f32 %v158, %v162
    %v164 = vmul.f32 %v157, %v163
    %vm165 = vcmp.eq.f32.partialorder %v157, inf
    %v166 = vsel %vm165, %v157, %v164
    %vm167 = vcmp.eq.f32.partialorder %v157, 0.0
    %v168 = vand.u32 %v157, 2147483648
    %v169 = vsel %vm167, %v168, %v166
    %v170 = vsel %vm156, %v169, 0.0
    %171 = vrot.lane.b32.xlu0 %v30, 127
    %v172 = vpop.permute.xlu0 %171
    %173 = vrot.lane.b32.xlu0 %v32, 127
    %v174 = vpop.permute.xlu0 %173
    %175 = vrot.lane.b32.xlu0 %v34, 127
    %v176 = vpop.permute.xlu0 %175
    %v177 = vsub.f32 %v30, %v172
    %v178 = vsub.f32 %v32, %v174
    %v179 = vsub.f32 %v34, %v176
    %v180 = vmul.f32 %v177, %v177
    %v181 = vmul.f32 %v178, %v178
    %v182 = vadd.f32 %v180, %v181
    %v183 = vmul.f32 %v179, %v179
    %v184 = vadd.f32 %v182, %v183
    %v185 = vadd.f32 %v184, 3e-08
    %v186 = vrsqrt.pop %v185
    %v187 = vmul.f32 %v186, %v185
    %v188 = vmul.f32 %v187, %v186
    %v189 = vmul.f32 0.5, %v188
    %v190 = vsub.f32 1.5, %v189
    %v191 = vmul.f32 %v186, %v190
    %v192 = vmul.f32 %v185, %v191
    %vm193 = vcmp.eq.f32.partialorder %v185, inf
    %v194 = vsel %vm193, %v185, %v192
    %vm195 = vcmp.eq.f32.partialorder %v185, 0.0
    %v196 = vand.u32 %v185, 2147483648
    %v197 = vsel %vm195, %v196, %v194
    %v198 = vsub.f32 %v197, 3.8
    %v199 = vmul.f32 %v198, %v198
    %v200 = vsub.f32 %v199, 0.01
    %vm201 = vcmp.gt.f32.partialorder %v200, 0.0
    %v202 = vsel %vm201, %v200, 1.0
    %v203 = vrsqrt.pop %v202
    %v204 = vmul.f32 %v203, %v202
    %v205 = vmul.f32 %v204, %v203
    %v206 = vmul.f32 0.5, %v205
    %v207 = vsub.f32 1.5, %v206
    %v208 = vmul.f32 %v203, %v207
    %v209 = vmul.f32 %v202, %v208
    %vm210 = vcmp.eq.f32.partialorder %v202, inf
    %v211 = vsel %vm210, %v202, %v209
    %vm212 = vcmp.eq.f32.partialorder %v202, 0.0
    %v213 = vand.u32 %v202, 2147483648
    %v214 = vsel %vm212, %v213, %v211
    %v215 = vsel %vm201, %v214, 0.0
    %v216 = vadd.f32 %v170, %v215
    %vm217 = vcmp.lt.s32.totalorder %v42, 127
    %v218 = vsel %vm217, 1, 0
    %v219 = vcvt.s32.f32 %v218
    %v220 = vmul.f32 %v216, %v219
    %v221 = vsel %vm122, %v220, 0.0
    %222 = vadd.xlane.f32.xlu0 %v221
    %v223 = vpop.xlane.xlu0 %222
    %v224 = vmul.f32 %v125, 0.001953125
    %v225 = vmul.f32 %v223, 0.001968504
    %v226 = vadd.f32 %v224, %v225
    %vm227 = vcmask 1024
    %228 = vst.msk [vmem:[%s1] sm:$0x3] %vm227, %v226
    // Predicated region
    $region10: #{tpu_custom_call.1} parent=1 // pred_check
      _
    $region11: #{tpu_custom_call.1} parent=1 // pred_check_branch
      %230 = sbr.rel (0) target = $region13
    $region12: #{tpu_custom_call.1} parent=1 // pred_region
      _
    $region13: #{tpu_custom_call.1} parent=1 // pred_fallthru
      _
    // Predicated region
    $region14: #{tpu_custom_call.1} parent=1 // pred_check
      _
    $region15: #{tpu_custom_call.1} parent=1 // pred_check_branch
      %232 = sbr.rel (0) target = $region17
    $region16: #{tpu_custom_call.1} parent=1 // pred_region
      _
    $region17: #{tpu_custom_call.1} parent=1 // pred_fallthru
      _
    %233 = vsyncpa [#allocation3], 1

</llo_original>
